<compile_context>
chip_gen: v6e
topology: v6e:2x2x1
jax: 0.10.0
libtpu: 0.0.40
codegen_flags: <defaults>
</compile_context>

<pallas_src>
import jax
import jax.numpy as jnp
from jax.experimental import pallas as pl
from jax.experimental.pallas import tpu as pltpu


def _attention_kernel(b_ref, x_ref, w_ref, out_ref):
    """Single-query attention over the time axis.

    b_ref:   SMEM (1,)   f32  -- Linear(H,1) bias (kept for fidelity)
    x_ref:   VMEM (Bt, T, H)  -- native dtype (bf16/f32), cast to f32 in-kernel
    w_ref:   VMEM (1, H) f32  -- Linear(H,1) weight row
    out_ref: VMEM (Bt, H)     -- context vectors
    """
    w = w_ref[0, :].astype(jnp.float32)                       # (H,)

    # attention_scores = x @ w^T + b : VPU multiply + XLU lane reduce
    # (avoids a degenerate batched M=1 MXU matmul).
    x0 = x_ref[...].astype(jnp.float32)                       # streamed read #1
    scores = jnp.sum(x0 * w, axis=-1) + b_ref[0]              # (Bt, T)

    # Softmax over time (torch dim=1), numerically stable; divide -> EUP recip.
    m = jnp.max(scores, axis=-1, keepdims=True)
    e = jnp.exp(scores - m)
    inv_l = pl.reciprocal(jnp.sum(e, axis=-1, keepdims=True), approx=True)
    attw = e * inv_l                                           # (Bt, T)

    # context = sum_t attw[b, t] * x[b, t, :] : VALU mul + XLU sublane reduce.
    # Re-read x_ref so the full tile isn't kept live across the softmax.
    x1 = x_ref[...].astype(jnp.float32)                       # streamed read #2
    ctx = jnp.sum(attw[:, :, None] * x1, axis=1)               # (Bt, H)
    out_ref[...] = ctx.astype(out_ref.dtype)


def _round_up(x, m):
    return ((x + m - 1) // m) * m


def _choose_block_b(B, T, H, itemsize):
    """Rows per grid step: ~4 MiB x tile, 8-sublane aligned, >=2 grid steps
    when B allows so v7x megacore shards the 'parallel' axis across both TCs."""
    target_bytes = 4 * 1024 * 1024
    per_row = max(1, T * H * itemsize)
    bb = max(1, target_bytes // per_row)
    bb = min(bb, 2048)                      # bound vreg/unroll pressure
    if B <= 8:
        return B                            # single block; last-2 dims stay full
    bb = max(8, (bb // 8) * 8)
    half = _round_up(-(-B // 2), 8)         # >= 2 grid steps (v7x has 2 TCs)
    bb = min(bb, half, _round_up(B, 8))
    return int(bb)


def attention_forward(lstm_output, weight, bias, *, block_b=None):
    """Pallas TPU forward matching PyTorch `Attention.forward`.

    lstm_output: (B, T, H)  any float dtype (streamed at native width)
    weight:      (1, H)     nn.Linear(H, 1).weight
    bias:        (1,)       nn.Linear(H, 1).bias
    returns:     (B, H)     context vectors, in lstm_output.dtype
    """
    B, T, H = lstm_output.shape
    w = weight.astype(jnp.float32).reshape(1, H)
    b = bias.astype(jnp.float32).reshape(1)

    if block_b is None:
        block_b = _choose_block_b(B, T, H, lstm_output.dtype.itemsize)
    grid = (pl.cdiv(B, block_b),)
    # TODO(synk): for very large T*H (where even an 8-row tile exceeds the VMEM
    # budget, earliest on v7x) add a T grid axis with online-softmax (m/l/acc)
    # accumulators instead of shrinking block_b below 8.

    return pl.pallas_call(
        _attention_kernel,
        out_shape=jax.ShapeDtypeStruct((B, H), lstm_output.dtype),
        grid=grid,
        in_specs=[
            pl.BlockSpec(memory_space=pltpu.MemorySpace.SMEM),    # bias scalar
            pl.BlockSpec((block_b, T, H), lambda i: (i, 0, 0)),   # x slab
            pl.BlockSpec((1, H), lambda i: (0, 0)),               # weight row
        ],
        out_specs=pl.BlockSpec((block_b, H), lambda i: (i, 0)),
        compiler_params=pltpu.CompilerParams(
            dimension_semantics=("parallel",),
            vmem_limit_bytes=32 * 1024 * 1024,
        ),
    )(b, lstm_output, w)


if __name__ == "__main__":
    B, T, hidden_dim = 2, 16, 32

    key = jax.random.PRNGKey(0)
    kx, kw, kb = jax.random.split(key, 3)
    lstm_output = jax.random.normal(kx, (B, T, hidden_dim), jnp.float32)
    bound = float(hidden_dim) ** -0.5
    weight = jax.random.uniform(kw, (1, hidden_dim), jnp.float32, -bound, bound)
    bias = jax.random.uniform(kb, (1,), jnp.float32, -bound, bound)

    ctx = attention_forward(lstm_output, weight, bias)
    jax.block_until_ready(ctx)

    # Pure-JAX reference mirroring the PyTorch forward.
    def ref_fn(x, w, b):
        scores = x @ w.T + b                      # (B, T, 1)
        attw = jax.nn.softmax(scores, axis=1)     # Softmax(dim=1)
        return jnp.sum(attw * x, axis=1)          # (B, H)

    ref = ref_fn(lstm_output, weight, bias)
    assert ctx.shape == (B, hidden_dim), ctx.shape
    assert bool(jnp.all(jnp.isfinite(ctx)))
    assert bool(jnp.allclose(ctx, ref, rtol=5e-3, atol=5e-3)), (
        float(jnp.max(jnp.abs(ctx - ref))))

    # Larger bf16 check: native-dtype streaming + multi-step 'parallel' grid.
    B2 = 256
    x2 = jax.random.normal(jax.random.PRNGKey(1), (B2, T, hidden_dim),
                           jnp.float32).astype(jnp.bfloat16)
    ctx2 = attention_forward(x2, weight, bias)
    jax.block_until_ready(ctx2)
    ref2 = ref_fn(x2.astype(jnp.float32), weight, bias)
    assert ctx2.shape == (B2, hidden_dim), ctx2.shape
    assert bool(jnp.allclose(ctx2.astype(jnp.float32), ref2,
                             rtol=2e-2, atol=2e-2)), (
        float(jnp.max(jnp.abs(ctx2.astype(jnp.float32) - ref2))))

    print("KERNEL_OK")
</pallas_src>

<mosaic_0001>
module attributes {stable_mosaic.version = 11 : i64} {
  func.func @_attention_kernel(%arg0: i32, %arg1: memref<1xf32, #tpu.memory_space<smem>>, %arg2: memref<2x16x32xf32, #tpu.memory_space<vmem>>, %arg3: memref<1x32xf32, #tpu.memory_space<vmem>>, %arg4: memref<2x32xf32, #tpu.memory_space<vmem>>) attributes {dimension_semantics = [#tpu.dimension_semantics<parallel>], iteration_bounds = array<i64: 1>, scalar_prefetch = 0 : i64, scratch_operands = 0 : i64, tpu.core_type = #tpu.core_type<tc>, window_params = [{transform_indices = @transform_0, window_bounds = array<i64: 1>}, {transform_indices = @transform_1, window_bounds = array<i64: 2, 16, 32>}, {pipeline_mode = #tpu.pipeline_mode<synchronous>, transform_indices = @transform_2, window_bounds = array<i64: 1, 32>}, {transform_indices = @transform_3, window_bounds = array<i64: 2, 32>}]} {
    %c0 = arith.constant 0 : index
    %c0_0 = arith.constant 0 : index
    %0 = vector.load %arg3[%c0, %c0_0] : memref<1x32xf32, #tpu.memory_space<vmem>>, vector<1x32xf32>
    %1 = vector.shape_cast %0 : vector<1x32xf32> to vector<32xf32>
    %c0_1 = arith.constant 0 : index
    %c0_2 = arith.constant 0 : index
    %c0_3 = arith.constant 0 : index
    %2 = vector.load %arg2[%c0_1, %c0_2, %c0_3] : memref<2x16x32xf32, #tpu.memory_space<vmem>>, vector<2x16x32xf32>
    %3 = vector.shape_cast %1 : vector<32xf32> to vector<1x1x32xf32>
    %4 = vector.broadcast %3 : vector<1x1x32xf32> to vector<2x16x32xf32>
    %5 = arith.mulf %2, %4 : vector<2x16x32xf32>
    %cst = arith.constant dense<0.000000e+00> : vector<2x16xf32>
    %6 = vector.multi_reduction <add>, %5, %cst [2] : vector<2x16x32xf32> to vector<2x16xf32>
    %c0_4 = arith.constant 0 : index
    %7 = memref.load %arg1[%c0_4] : memref<1xf32, #tpu.memory_space<smem>>
    %8 = vector.broadcast %7 : f32 to vector<2x16xf32>
    %9 = arith.addf %6, %8 : vector<2x16xf32>
    %cst_5 = arith.constant dense<0xFF800000> : vector<2xf32>
    %10 = vector.multi_reduction <maximumf>, %9, %cst_5 [1] : vector<2x16xf32> to vector<2xf32>
    %11 = vector.shape_cast %10 : vector<2xf32> to vector<2x1xf32>
    %12 = vector.broadcast %11 : vector<2x1xf32> to vector<2x16xf32>
    %13 = arith.subf %9, %12 : vector<2x16xf32>
    %14 = math.exp %13 : vector<2x16xf32>
    %cst_6 = arith.constant dense<0.000000e+00> : vector<2xf32>
    %15 = vector.multi_reduction <add>, %14, %cst_6 [1] : vector<2x16xf32> to vector<2xf32>
    %16 = vector.shape_cast %15 : vector<2xf32> to vector<2x1xf32>
    %17 = tpu.reciprocal %16 {approx = true} : vector<2x1xf32> -> vector<2x1xf32>
    %18 = vector.broadcast %17 : vector<2x1xf32> to vector<2x16xf32>
    %19 = arith.mulf %14, %18 : vector<2x16xf32>
    %c0_7 = arith.constant 0 : index
    %c0_8 = arith.constant 0 : index
    %c0_9 = arith.constant 0 : index
    %20 = vector.load %arg2[%c0_7, %c0_8, %c0_9] : memref<2x16x32xf32, #tpu.memory_space<vmem>>, vector<2x16x32xf32>
    %21 = vector.shape_cast %19 : vector<2x16xf32> to vector<2x16x1xf32>
    %22 = vector.broadcast %21 : vector<2x16x1xf32> to vector<2x16x32xf32>
    %23 = arith.mulf %22, %20 : vector<2x16x32xf32>
    %cst_10 = arith.constant dense<0.000000e+00> : vector<2x32xf32>
    %24 = vector.multi_reduction <add>, %23, %cst_10 [1] : vector<2x16x32xf32> to vector<2x32xf32>
    %c0_11 = arith.constant 0 : index
    %c0_12 = arith.constant 0 : index
    %25 = vector.load %arg4[%c0_11, %c0_12] : memref<2x32xf32, #tpu.memory_space<vmem>>, vector<2x32xf32>
    tpu.vector_store %arg4[%c0_11, %c0_12], %24 {strides = array<i32>} : memref<2x32xf32, #tpu.memory_space<vmem>>, vector<2x32xf32>,
    return
  }
  func.func @transform_0(%arg0: i32) -> i32 {
    %c0_i32 = arith.constant 0 : i32
    %c0_i32_0 = arith.constant 0 : i32
    return %c0_i32 : i32
  }
  func.func @transform_1(%arg0: i32) -> (i32, i32, i32) {
    %c0_i32 = arith.constant 0 : i32
    %c0_i32_0 = arith.constant 0 : i32
    %c0_i32_1 = arith.constant 0 : i32
    return %arg0, %c0_i32, %c0_i32_0 : i32, i32, i32
  }
  func.func @transform_2(%arg0: i32) -> (i32, i32) {
    %c0_i32 = arith.constant 0 : i32
    %c0_i32_0 = arith.constant 0 : i32
    %c0_i32_1 = arith.constant 0 : i32
    return %c0_i32, %c0_i32_0 : i32, i32
  }
  func.func @transform_3(%arg0: i32) -> (i32, i32) {
    %c0_i32 = arith.constant 0 : i32
    %c0_i32_0 = arith.constant 0 : i32
    return %arg0, %c0_i32 : i32, i32
  }
}

</mosaic_0001>

<llo_original>
// kernel: tpu_custom_call.1
$region0: #{tpu_custom_call.1}
  #allocation0 [shape = 'u32[]', space=smem, size = 0x4, offset = 0x4, fixed_abs, tag = 'smem constant byte address 0x4 - core index']
  #allocation1 [shape = 'u32[144,128]{1,0:T(1,128)}', space=vmem, size = 0x12000, scoped, tag = 'internal scratch']
  #allocation2 [shape = 'f32[1]{0:T(128)S(6)}', space=smem, size = 0x200, scoped, tag = 'scoped memory for tpu_custom_call.1']
  %s0 = inlined_call_operand.<no memory space> [shape: f32[1], index: 0, kind: input, shape index: {}]
  %s1 = inlined_call_operand.hbm [shape: f32[2,16,32], index: 1, kind: input, shape index: {}]
  %s2 = inlined_call_operand.vmem [shape: f32[1,32], index: 2, kind: input, shape index: {}]
  %s3 = inlined_call_operand.hbm [shape: f32[2,32], index: 3, kind: output, shape index: {}]
  %s4 = sld [smem:[#allocation0]]
  $region26: #{tpu_custom_call.1} parent=0
    _
  %s6 = ssub.s32 1, %s4
  %s7 = scalar_select 0, %s6, %s4
  %8 = sst [smem:[#allocation2]] %s0
  $region1: #{tpu_custom_call.1} parent=0
    #allocation3 [shape = 'u8[16384]{0}', space=vmem, size = 0x4000, scoped, tag = 'input window, operand 1, single buffered']
    #allocation4 [shape = 's32[1]{0}', space=sflag, size = 0x4, scoped, tag = 'scoped memory for tpu_custom_call.1']
    #allocation5 [shape = 's32[1]{0}', space=sflag, size = 0x4, scoped, tag = 'scoped memory for tpu_custom_call.1']
    #allocation6 [shape = 'u8[1024]{0}', space=vmem, size = 0x400, scoped, tag = 'output window, operand 0, single buffered']
    %9 = vsyncpa [#allocation4], 0
    %10 = vsyncpa [#allocation5], 0
    // Predicated region
    $region2: #{tpu_custom_call.1} parent=1 // pred_check
      _
    $region3: #{tpu_custom_call.1} parent=1 // pred_check_branch
      %12 = sbr.rel (0) target = $region5
    $region4: #{tpu_custom_call.1} parent=1 // pred_region
      _
    $region5: #{tpu_custom_call.1} parent=1 // pred_fallthru
      _
    // Predicated region
    $region6: #{tpu_custom_call.1} parent=1 // pred_check
      _
    $region7: #{tpu_custom_call.1} parent=1 // pred_check_branch
      %14 = sbr.rel (0) target = $region9
    $region8: #{tpu_custom_call.1} parent=1 // pred_region
      %s16 = ssub.s32 512, 512
      %17 = vsyncadd [#allocation4], %s16
      %s18 = sshll.u32 [#allocation3], 4
      %s19 = int_to_ptr.vmem [resolvable:$true] %s18
      %24 = dma.hbm_to_vmem [thread:$0]  %s1, 512, %s19, [#allocation4], 128, 128, 8
    $region9: #{tpu_custom_call.1} parent=1 // pred_fallthru
      _
    // Predicated region
    $region10: #{tpu_custom_call.1} parent=1 // pred_check
      _
    $region11: #{tpu_custom_call.1} parent=1 // pred_check_branch
      %26 = sbr.rel (0) target = $region13
    $region12: #{tpu_custom_call.1} parent=1 // pred_region
      _
    $region13: #{tpu_custom_call.1} parent=1 // pred_fallthru
      _
    // Predicated region
    $region14: #{tpu_custom_call.1} parent=1 // pred_check
      _
    $region15: #{tpu_custom_call.1} parent=1 // pred_check_branch
      %28 = sbr.rel (0) target = $region17
    $region16: #{tpu_custom_call.1} parent=1 // pred_region
      %29 = dma.done [#allocation4], 512
    $region17: #{tpu_custom_call.1} parent=1 // pred_fallthru
      _
    %v30 = vld [vmem:[%s2] sm:$0x1]
    %v31 = vld [vmem:[#allocation3] sm:$0xff]
    %v32 = vld [vmem:[#allocation3 + $0x8] sm:$0xff]
    %v33 = vld [vmem:[#allocation3 + $0x10] sm:$0xff]
    %v34 = vld [vmem:[#allocation3 + $0x18] sm:$0xff]
    %v36 = vlaneseq
    %v37 = vshrl.u32 %v36, 7
    %v38 = vsub.s32 0, %v37
    %v39 = vrot.slane %v30, %v38
    %v41 = vmul.f32 %v31, %v39
    %v42 = vmul.f32 %v32, %v39
    %v43 = vmul.f32 %v33, %v39
    %v44 = vmul.f32 %v34, %v39
    %vm45 = vcmask 261120
    %v46 = vsel %vm45, %v41, 0.0
    %47 = vadd.xlane.f32.xlu0 %v46
    %v48 = vpop.xlane.xlu0 %47
    %v49 = vsel %vm45, %v42, 0.0
    %50 = vadd.xlane.f32.xlu0 %v49
    %v51 = vpop.xlane.xlu0 %50
    %v52 = vsel %vm45, %v43, 0.0
    %53 = vadd.xlane.f32.xlu0 %v52
    %v54 = vpop.xlane.xlu0 %53
    %v55 = vsel %vm45, %v44, 0.0
    %56 = vadd.xlane.f32.xlu0 %v55
    %v57 = vpop.xlane.xlu0 %56
    %s58 = sld [smem:[#allocation2]]
    %v59 = vstv %s58
    %v60 = vadd.f32 %v48, %v59
    %v61 = vadd.f32 %v51, %v59
    %v62 = vadd.f32 %v54, %v59
    %v63 = vadd.f32 %v57, %v59
    %v68 = vlaneseq
    %v69 = vand.u32 %v68, 127
    %v70 = vlaneseq
    %v71 = vshrl.u32 %v70, 7
    %v72 = vsub.s32 %v69, %v71
    %v73 = vrot.slane %v60, %v72
    %v74 = vadd.s32 %v69, 4294967288
    %v75 = vlaneseq
    %v76 = vshrl.u32 %v75, 7
    %v77 = vsub.s32 %v74, %v76
    %v78 = vrot.slane %v61, %v77
    %vm79 = vcmask 130112
    %v80 = vsel %vm79, %v78, %v73
    %v81 = vlaneseq
    %v82 = vshrl.u32 %v81, 7
    %v83 = vsub.s32 %v69, %v82
    %v84 = vrot.slane %v62, %v83
    %v85 = vlaneseq
    %v86 = vshrl.u32 %v85, 7
    %v87 = vsub.s32 %v74, %v86
    %v88 = vrot.slane %v63, %v87
    %v89 = vsel %vm79, %v88, %v84
    %vm90 = vcmask 1041409
    %v91 = vsel %vm90, %v89, %v80
    %vm93 = vcmask 123904
    %v94 = vsel %vm93, %v91, -inf
    %95 = vmax.xlane.f32.xlu0 %v94
    %v96 = vpop.xlane.xlu0 %95
    %v98 = vlaneseq
    %v99 = vshrl.u32 %v98, 7
    %v100 = vsub.s32 0, %v99
    %v101 = vrot.slane %v96, %v100
    %v102 = vlaneseq
    %v103 = vshrl.u32 %v102, 7
    %v104 = vsub.s32 1, %v103
    %v105 = vrot.slane %v96, %v104
    %v108 = vsub.f32 %v60, %v101
    %v109 = vsub.f32 %v61, %v101
    %v110 = vsub.f32 %v62, %v105
    %v111 = vsub.f32 %v63, %v105
    %v112 = vmul.f32 %v108, 1.442695
    %v113 = vpow.pop %v112
    %v114 = vmul.f32 %v109, 1.442695
    %v115 = vpow.pop %v114
    %v116 = vmul.f32 %v110, 1.442695
    %v117 = vpow.pop %v116
    %v118 = vmul.f32 %v111, 1.442695
    %v119 = vpow.pop %v118
    %124 = vset.pattern.permute.xlu0 0
    %125 = vperm.xlu0 %124, %v113
    %v126 = vpop.permute.xlu0 %125
    %127 = vset.pattern.permute.xlu0 0
    %128 = vperm.xlu0 %127, %v115
    %v129 = vpop.permute.xlu0 %128
    %130 = vset.pattern.permute.xlu0 0
    %131 = vperm.xlu0 %130, %v117
    %v132 = vpop.permute.xlu0 %131
    %133 = vset.pattern.permute.xlu0 0
    %134 = vperm.xlu0 %133, %v119
    %v135 = vpop.permute.xlu0 %134
    %v136 = vlaneseq
    %v137 = vshrl.u32 %v136, 7
    %v138 = vsub.s32 %v69, %v137
    %v139 = vrot.slane %v126, %v138
    %v140 = vlaneseq
    %v141 = vshrl.u32 %v140, 7
    %v142 = vsub.s32 %v74, %v141
    %v143 = vrot.slane %v129, %v142
    %v144 = vsel %vm79, %v143, %v139
    %v145 = vlaneseq
    %v146 = vshrl.u32 %v145, 7
    %v147 = vsub.s32 %v69, %v146
    %v148 = vrot.slane %v132, %v147
    %v149 = vlaneseq
    %v150 = vshrl.u32 %v149, 7
    %v151 = vsub.s32 %v74, %v150
    %v152 = vrot.slane %v135, %v151
    %v153 = vsel %vm79, %v152, %v148
    %v154 = vsel %vm90, %v153, %v144
    %v156 = vsel %vm93, %v154, 0.0
    %157 = vadd.xlane.f32.xlu0 %v156
    %v158 = vpop.xlane.xlu0 %157
    %v159 = vrcp.pop %v158
    %v161 = vlaneseq
    %v162 = vshrl.u32 %v161, 7
    %v163 = vsub.s32 0, %v162
    %v164 = vrot.slane %v159, %v163
    %v165 = vlaneseq
    %v166 = vshrl.u32 %v165, 7
    %v167 = vsub.s32 1, %v166
    %v168 = vrot.slane %v159, %v167
    %v171 = vmul.f32 %v113, %v164
    %v172 = vmul.f32 %v115, %v164
    %v173 = vmul.f32 %v117, %v168
    %v174 = vmul.f32 %v119, %v168
    %176 = vset.pattern.permute.xlu0 0
    %177 = vperm.xlu0 %176, %v171
    %v178 = vpop.permute.xlu0 %177
    %181 = vset.pattern.permute.xlu0 0
    %182 = vperm.xlu0 %181, %v172
    %v183 = vpop.permute.xlu0 %182
    %186 = vset.pattern.permute.xlu0 0
    %187 = vperm.xlu0 %186, %v173
    %v188 = vpop.permute.xlu0 %187
    %191 = vset.pattern.permute.xlu0 0
    %192 = vperm.xlu0 %191, %v174
    %v193 = vpop.permute.xlu0 %192
    %v195 = vmul.f32 %v178, %v31
    %v196 = vmul.f32 %v183, %v32
    %v197 = vmul.f32 %v188, %v33
    %v198 = vmul.f32 %v193, %v34
    %v199 = vsel %vm45, %v195, 0.0
    %v200 = vsel %vm45, %v196, 0.0
    %v201 = vadd.f32 %v199, %v200
    %v202 = vrot.slane %v201, 4
    %v203 = vadd.f32 %v201, %v202
    %v204 = vrot.slane %v203, 2
    %v205 = vadd.f32 %v203, %v204
    %v206 = vrot.slane %v205, 1
    %v207 = vadd.f32 %v205, %v206
    %v208 = vsel %vm45, %v197, 0.0
    %v209 = vsel %vm45, %v198, 0.0
    %v210 = vadd.f32 %v208, %v209
    %v211 = vrot.slane %v210, 4
    %v212 = vadd.f32 %v210, %v211
    %v213 = vrot.slane %v212, 2
    %v214 = vadd.f32 %v212, %v213
    %v215 = vrot.slane %v214, 1
    %v216 = vadd.f32 %v214, %v215
    %v219 = vsel %vm90, %v216, %v207
    %vm221 = vcmask 254976
    %222 = vst.msk [vmem:[#allocation6] sm:$0x3] %vm221, %v219
    // Predicated region
    $region18: #{tpu_custom_call.1} parent=1 // pred_check
      _
    $region19: #{tpu_custom_call.1} parent=1 // pred_check_branch
      %224 = sbr.rel (0) target = $region21
    $region20: #{tpu_custom_call.1} parent=1 // pred_region
      %s226 = ssub.s32 32, 32
      %227 = vsyncadd [#allocation5], %s226
      %s229 = sshll.u32 [#allocation6], 4
      %s230 = int_to_ptr.vmem [resolvable:$true] %s229
      %232 = dma.vmem_to_hbm [thread:$0]  %s230, 32, %s3, [#allocation5]
    $region21: #{tpu_custom_call.1} parent=1 // pred_fallthru
      _
    // Predicated region
    $region22: #{tpu_custom_call.1} parent=1 // pred_check
      _
    $region23: #{tpu_custom_call.1} parent=1 // pred_check_branch
      %234 = sbr.rel (0) target = $region25
    $region24: #{tpu_custom_call.1} parent=1 // pred_region
      %235 = dma.done [#allocation5], 32
    $region25: #{tpu_custom_call.1} parent=1 // pred_fallthru
      _
    %236 = vsyncpa [#allocation4], 1
    %237 = vsyncpa [#allocation5], 1

</llo_original>
